<compile_context>
chip_gen: v5e
topology: v5e:2x2
jax: 0.10.0
libtpu: 0.0.40
codegen_flags: <defaults>
</compile_context>

<pallas_src>
import functools
import math

import jax
import jax.numpy as jnp
from jax.experimental import pallas as pl
from jax.experimental.pallas import tpu as pltpu


def _round_up(x, m):
    return ((x + m - 1) // m) * m


def _tpu_tile_config():
    """Return (kv_tile_cap, vmem_limit_bytes) per TPU generation.

    v5e / v5p / v6e have 128 MiB of VMEM per core -> bigger kv tiles and a
    higher scoped-VMEM limit.  v7x halves VMEM to 64 MiB; unknown chips get
    the same conservative treatment.
    """
    try:
        kind = jax.devices()[0].device_kind.lower()
    except Exception:
        kind = ""
    if ("v5" in kind) or ("v6" in kind):
        return 512, 96 * 1024 * 1024
    return 256, 48 * 1024 * 1024


# -----------------------------------------------------------------------------
# Kernel 1: fused QKV projection (one big matmul over padded B*N rows).
# -----------------------------------------------------------------------------
def _qkv_proj_kernel(x_ref, w_ref, b_ref, qkv_ref):
    x = x_ref[...]                                              # (tm, D) bf16
    acc = jnp.dot(x, w_ref[...], preferred_element_type=jnp.float32)
    qkv_ref[...] = (acc + b_ref[...]).astype(qkv_ref.dtype)     # (tm, 3D) lane-dense


# -----------------------------------------------------------------------------
# Kernel 2: flash attention (online softmax) + fused output projection.
# -----------------------------------------------------------------------------
def _flash_attn_kernel(q_ref, k_ref, v_ref, wo_ref, bo_ref, o_ref,
                       m_ref, l_ref, acc_ref, *, h, n_valid, need_mask):
    kv = pl.program_id(2)

    @pl.when(kv == 0)
    def _init():
        m_ref[...] = jnp.full_like(m_ref, -jnp.inf)
        l_ref[...] = jnp.zeros_like(l_ref)
        acc_ref[...] = jnp.zeros_like(acc_ref)

    qh = q_ref[0]                               # (h, tq, d_k) bf16, head-major via DMA
    kh = k_ref[0]                               # (h, tk, d_k) bf16
    vh = v_ref[0]                               # (h, tk, d_k) bf16
    tk = kh.shape[1]

    # (h, tq, tk) f32 scores; q already carries the 1/sqrt(d_k) scale.
    s = jnp.einsum('hqd,hkd->hqk', qh, kh, preferred_element_type=jnp.float32)

    if need_mask:
        col = jax.lax.broadcasted_iota(jnp.int32, (1, 1, tk), 2) + kv * tk
        s = jnp.where(col < n_valid, s, -jnp.inf)

    m_prev = m_ref[...]                                         # (h, tq, 1)
    m_new = jnp.maximum(m_prev, jnp.max(s, axis=-1, keepdims=True))
    alpha = jnp.exp(m_prev - m_new)
    # exp/elementwise chain kept in f32 (required on v5e; bf16 on v6e/v7x is a
    # possible further EUP win but compounds rounding error).
    p = jnp.exp(s - m_new)                                      # (h, tq, tk) f32
    l_ref[...] = alpha * l_ref[...] + jnp.sum(p, axis=-1, keepdims=True)
    acc_ref[...] = alpha * acc_ref[...] + jnp.einsum(
        'hqk,hkd->hqd', p.astype(jnp.bfloat16), vh,
        preferred_element_type=jnp.float32)
    m_ref[...] = m_new

    @pl.when(kv == pl.num_programs(2) - 1)
    def _finalize():
        inv_l = pl.reciprocal(l_ref[...], approx=True)          # (h, tq, 1)
        attn = (acc_ref[...] * inv_l).astype(jnp.bfloat16)      # (h, tq, d_k)
        # Head concat (lane direction), once per q tile, then a single MXU pass
        # against the un-reshaped (D, D) out-projection weight.
        attn2d = jnp.concatenate([attn[i] for i in range(h)], axis=-1)   # (tq, D)
        out = jnp.dot(attn2d, wo_ref[...],
                      preferred_element_type=jnp.float32) + bo_ref[...]  # (tq, D)
        o_ref[0] = out.astype(o_ref.dtype)


# -----------------------------------------------------------------------------
# Wrapper
# -----------------------------------------------------------------------------
def self_attention_pallas(x, params, h):
    """x: (B, N, d_model).  params: (in, out) weights and (1, out) biases."""
    B, N, D = x.shape
    assert D % h == 0, "d_model must be divisible by the number of heads"
    d_k = D // h
    q_scale = 1.0 / math.sqrt(d_k)

    kv_cap, vmem_limit = _tpu_tile_config()

    wq, bq = params["wq"], params["bq"]
    wk, bk = params["wk"], params["bk"]
    wv, bv = params["wv"], params["bv"]
    wo, bo = params["wo"], params["bo"]

    # ---- Kernel 1: fused QKV projection over flattened, padded rows ---------
    M = B * N
    tm = min(1024, _round_up(M, 8))
    M_pad = _round_up(M, tm)

    x2d = x.reshape(M, D).astype(jnp.bfloat16)
    if M_pad != M:
        x2d = jnp.pad(x2d, ((0, M_pad - M), (0, 0)))

    # Fold 1/sqrt(d_k) into the query projection once, at prep time.
    w_qkv = jnp.concatenate([wq * q_scale, wk, wv], axis=1).astype(jnp.bfloat16)
    b_qkv = jnp.concatenate([bq * q_scale, bk, bv], axis=1).astype(jnp.float32)

    qkv2d = pl.pallas_call(
        _qkv_proj_kernel,
        out_shape=jax.ShapeDtypeStruct((M_pad, 3 * D), jnp.bfloat16),
        grid_spec=pltpu.PrefetchScalarGridSpec(
            num_scalar_prefetch=0,
            grid=(M_pad // tm,),
            in_specs=[
                pl.BlockSpec((tm, D), lambda i: (i, 0)),        # x rows
                pl.BlockSpec((D, 3 * D), lambda i: (0, 0)),     # fused W_qkv
                pl.BlockSpec((1, 3 * D), lambda i: (0, 0)),     # fused b_qkv
            ],
            out_specs=pl.BlockSpec((tm, 3 * D), lambda i: (i, 0)),
        ),
        compiler_params=pltpu.CompilerParams(
            dimension_semantics=("parallel",),
            vmem_limit_bytes=vmem_limit),
    )(x2d, w_qkv, b_qkv)

    # ---- Head-major relayout (single XLA transpose between the kernels) -----
    qkv = qkv2d[:M].reshape(B, N, 3, h, d_k)
    qkv = jnp.transpose(qkv, (2, 0, 3, 1, 4))                   # (3, B, h, N, d_k)
    q, k, v = qkv[0], qkv[1], qkv[2]

    # ---- Kernel 2: flash attention + output projection -----------------------
    t = min(kv_cap, _round_up(N, 8))                            # q and kv tile
    N_pad = _round_up(N, t)
    if N_pad != N:
        pad = ((0, 0), (0, 0), (0, N_pad - N), (0, 0))
        q, k, v = jnp.pad(q, pad), jnp.pad(k, pad), jnp.pad(v, pad)

    wo_bf = wo.astype(jnp.bfloat16)
    bo_f32 = bo.astype(jnp.float32)

    grid = (B, N_pad // t, N_pad // t)
    attn_kernel = functools.partial(
        _flash_attn_kernel, h=h, n_valid=N, need_mask=(N_pad != N))

    out = pl.pallas_call(
        attn_kernel,
        out_shape=jax.ShapeDtypeStruct((B, N_pad, D), x.dtype),
        grid_spec=pltpu.PrefetchScalarGridSpec(
            num_scalar_prefetch=0,
            grid=grid,
            in_specs=[
                pl.BlockSpec((1, h, t, d_k), lambda b, qi, ki: (b, 0, qi, 0)),  # q
                pl.BlockSpec((1, h, t, d_k), lambda b, qi, ki: (b, 0, ki, 0)),  # k
                pl.BlockSpec((1, h, t, d_k), lambda b, qi, ki: (b, 0, ki, 0)),  # v
                pl.BlockSpec((D, D), lambda b, qi, ki: (0, 0)),                 # wo
                pl.BlockSpec((1, D), lambda b, qi, ki: (0, 0)),                 # bo
            ],
            out_specs=pl.BlockSpec((1, t, D), lambda b, qi, ki: (b, qi, 0)),
            scratch_shapes=[
                pltpu.VMEM((h, t, 1), jnp.float32),     # running max m
                pltpu.VMEM((h, t, 1), jnp.float32),     # running sum l
                pltpu.VMEM((h, t, d_k), jnp.float32),   # output accumulator
            ],
        ),
        compiler_params=pltpu.CompilerParams(
            dimension_semantics=("parallel", "parallel", "arbitrary"),
            vmem_limit_bytes=vmem_limit),
    )(q, k, v, wo_bf, bo_f32)

    return out[:, :N] if N_pad != N else out


# -----------------------------------------------------------------------------
# Params / reference
# -----------------------------------------------------------------------------
def init_params(key, d_model, w_std=0.001, b_std=0.0):
    """SelfAttention.init_weights: Linear weight ~ N(0, 0.001), bias = 0.
    Weights stored pre-transposed as (in, out) so y = x @ W + b."""
    ks = jax.random.split(key, 8)
    mk_w = lambda k: jax.random.normal(k, (d_model, d_model), jnp.float32) * w_std
    mk_b = lambda k: jax.random.normal(k, (1, d_model), jnp.float32) * b_std
    return {
        "wq": mk_w(ks[0]), "bq": mk_b(ks[1]),
        "wk": mk_w(ks[2]), "bk": mk_b(ks[3]),
        "wv": mk_w(ks[4]), "bv": mk_b(ks[5]),
        "wo": mk_w(ks[6]), "bo": mk_b(ks[7]),
    }


def reference_mhsa(x, params, h):
    """Pure-JAX f32 reference replicating the PyTorch forward (no dropout)."""
    B, N, D = x.shape
    d_k = D // h
    q = x @ params["wq"] + params["bq"]
    k = x @ params["wk"] + params["bk"]
    v = x @ params["wv"] + params["bv"]
    q = q.reshape(B, N, h, d_k).transpose(0, 2, 1, 3)           # (B,h,N,dk)
    k = k.reshape(B, N, h, d_k).transpose(0, 2, 3, 1)           # (B,h,dk,N)
    v = v.reshape(B, N, h, d_k).transpose(0, 2, 1, 3)           # (B,h,N,dv)
    att = jnp.matmul(q, k) / math.sqrt(d_k)
    att = jax.nn.softmax(att, axis=-1)
    out = jnp.matmul(att, v).transpose(0, 2, 1, 3).reshape(B, N, h * d_k)
    return out @ params["wo"] + params["bo"]


if __name__ == "__main__":
    key = jax.random.PRNGKey(0)
    k_x1, k_p1, k_x2, k_p2 = jax.random.split(key, 4)

    # --- Case 1: batch=2, 8x8 feature map -> N=64, d_model=32, 4 heads -------
    B, N, D, H = 2, 64, 32, 4
    x1 = jax.random.normal(k_x1, (B, N, D), jnp.float32)
    # The module inits Linear weights with std=0.001 / zero bias; larger std
    # here so the numerical check exercises the softmax path meaningfully.
    params1 = init_params(k_p1, D, w_std=0.1, b_std=0.02)
    out1 = jax.block_until_ready(self_attention_pallas(x1, params1, H))
    ref1 = reference_mhsa(x1, params1, H)
    assert out1.shape == (B, N, D)
    rel1 = float(jnp.max(jnp.abs(out1 - ref1)) / (jnp.max(jnp.abs(ref1)) + 1e-6))
    assert rel1 < 3e-2, f"case1 mismatch vs reference: rel_err={rel1}"

    # --- Case 2: awkward N (exercises padding + kv-column masking) -----------
    B2, N2 = 1, 300
    x2 = jax.random.normal(k_x2, (B2, N2, D), jnp.float32)
    params2 = init_params(k_p2, D, w_std=0.1, b_std=0.02)
    out2 = jax.block_until_ready(self_attention_pallas(x2, params2, H))
    ref2 = reference_mhsa(x2, params2, H)
    assert out2.shape == (B2, N2, D)
    rel2 = float(jnp.max(jnp.abs(out2 - ref2)) / (jnp.max(jnp.abs(ref2)) + 1e-6))
    assert rel2 < 3e-2, f"case2 mismatch vs reference: rel_err={rel2}"

    print("KERNEL_OK")
</pallas_src>

<mosaic_0001>
module attributes {stable_mosaic.version = 11 : i64} {
  func.func @_qkv_proj_kernel(%arg0: i32, %arg1: memref<128x32xbf16, #tpu.memory_space<vmem>>, %arg2: memref<32x96xbf16, #tpu.memory_space<vmem>>, %arg3: memref<1x96xf32, #tpu.memory_space<vmem>>, %arg4: memref<128x96xbf16, #tpu.memory_space<vmem>>) attributes {dimension_semantics = [#tpu.dimension_semantics<parallel>], iteration_bounds = array<i64: 1>, scalar_prefetch = 0 : i64, scratch_operands = 0 : i64, tpu.core_type = #tpu.core_type<tc>, window_params = [{transform_indices = @transform_0, window_bounds = array<i64: 128, 32>}, {pipeline_mode = #tpu.pipeline_mode<synchronous>, transform_indices = @transform_1, window_bounds = array<i64: 32, 96>}, {pipeline_mode = #tpu.pipeline_mode<synchronous>, transform_indices = @transform_2, window_bounds = array<i64: 1, 96>}, {transform_indices = @transform_3, window_bounds = array<i64: 128, 96>}]} {
    %c0 = arith.constant 0 : index
    %c0_0 = arith.constant 0 : index
    %0 = vector.load %arg1[%c0, %c0_0] : memref<128x32xbf16, #tpu.memory_space<vmem>>, vector<128x32xbf16>
    %c0_1 = arith.constant 0 : index
    %c0_2 = arith.constant 0 : index
    %1 = vector.load %arg2[%c0_1, %c0_2] : memref<32x96xbf16, #tpu.memory_space<vmem>>, vector<32x96xbf16>
    %cst = arith.constant dense<0.000000e+00> : vector<128x96xf32>
    %2 = tpu.matmul %0, %1, %cst {dimension_numbers = #tpu.dot_dimension_numbers<[1], [0], [0], [1], [0, 0, 1, 1], [], []>} : vector<128x32xbf16>, vector<32x96xbf16>, vector<128x96xf32> -> vector<128x96xf32>
    %c0_3 = arith.constant 0 : index
    %c0_4 = arith.constant 0 : index
    %3 = vector.load %arg3[%c0_3, %c0_4] : memref<1x96xf32, #tpu.memory_space<vmem>>, vector<1x96xf32>
    %4 = vector.broadcast %3 : vector<1x96xf32> to vector<128x96xf32>
    %5 = arith.addf %2, %4 : vector<128x96xf32>
    %6 = arith.truncf %5 : vector<128x96xf32> to vector<128x96xbf16>
    %c0_5 = arith.constant 0 : index
    %c0_6 = arith.constant 0 : index
    %7 = vector.load %arg4[%c0_5, %c0_6] : memref<128x96xbf16, #tpu.memory_space<vmem>>, vector<128x96xbf16>
    tpu.vector_store %arg4[%c0_5, %c0_6], %6 {strides = array<i32>} : memref<128x96xbf16, #tpu.memory_space<vmem>>, vector<128x96xbf16>,
    return
  }
  func.func @transform_0(%arg0: i32) -> (i32, i32) {
    %c0_i32 = arith.constant 0 : i32
    %c0_i32_0 = arith.constant 0 : i32
    return %arg0, %c0_i32 : i32, i32
  }
  func.func @transform_1(%arg0: i32) -> (i32, i32) {
    %c0_i32 = arith.constant 0 : i32
    %c0_i32_0 = arith.constant 0 : i32
    %c0_i32_1 = arith.constant 0 : i32
    return %c0_i32, %c0_i32_0 : i32, i32
  }
  func.func @transform_2(%arg0: i32) -> (i32, i32) {
    %c0_i32 = arith.constant 0 : i32
    %c0_i32_0 = arith.constant 0 : i32
    %c0_i32_1 = arith.constant 0 : i32
    return %c0_i32, %c0_i32_0 : i32, i32
  }
  func.func @transform_3(%arg0: i32) -> (i32, i32) {
    %c0_i32 = arith.constant 0 : i32
    %c0_i32_0 = arith.constant 0 : i32
    return %arg0, %c0_i32 : i32, i32
  }
}

</mosaic_0001>

<llo_original>
// kernel: tpu_custom_call.1
$region0: #{tpu_custom_call.1}
  #allocation0 [shape = 'u32[]', space=smem, size = 0x4, offset = 0x4, fixed_abs, tag = 'smem constant byte address 0x4 - core index']
  #allocation1 [shape = 'u32[72,128]{1,0:T(1,128)}', space=vmem, size = 0x9000, scoped, tag = 'internal scratch']
  %s0 = inlined_call_operand.vmem [shape: bf16[128,32], index: 0, kind: input, shape index: {}]
  %s1 = inlined_call_operand.vmem [shape: bf16[32,96], index: 1, kind: input, shape index: {}]
  %s2 = inlined_call_operand.vmem [shape: f32[1,96], index: 2, kind: input, shape index: {}]
  %s3 = inlined_call_operand.vmem [shape: bf16[128,96], index: 3, kind: output, shape index: {}]
  %s4 = sld [smem:[#allocation0]]
  $region22: #{tpu_custom_call.1} parent=0
    _
  %s6 = ssub.s32 1, %s4
  %s7 = scalar_select 0, %s6, %s4
  // Predicated region
  $region2: #{tpu_custom_call.1} parent=0 // pred_check
    _
  $region3: #{tpu_custom_call.1} parent=0 // pred_check_branch
    %9 = sbr.rel (0) target = $region5
  $region4: #{tpu_custom_call.1} parent=0 // pred_region
    _
  $region5: #{tpu_custom_call.1} parent=0 // pred_fallthru
    _
  // Predicated region
  $region6: #{tpu_custom_call.1} parent=0 // pred_check
    _
  $region7: #{tpu_custom_call.1} parent=0 // pred_check_branch
    %11 = sbr.rel (0) target = $region9
  $region8: #{tpu_custom_call.1} parent=0 // pred_region
    _
  $region9: #{tpu_custom_call.1} parent=0 // pred_fallthru
    _
  // Predicated region
  $region10: #{tpu_custom_call.1} parent=0 // pred_check
    _
  $region11: #{tpu_custom_call.1} parent=0 // pred_check_branch
    %13 = sbr.rel (0) target = $region13
  $region12: #{tpu_custom_call.1} parent=0 // pred_region
    _
  $region13: #{tpu_custom_call.1} parent=0 // pred_fallthru
    _
  %v15 = vld [vmem:[%s0] sm:$0xf]
  %v16 = vld [vmem:[%s0 + $0x4] sm:$0xf]
  %v17 = vld [vmem:[%s0 + $0x8] sm:$0xf]
  %v18 = vld [vmem:[%s0 + $0xc] sm:$0xf]
  %v19 = vld [vmem:[%s0 + $0x10] sm:$0xf]
  %v20 = vld [vmem:[%s0 + $0x14] sm:$0xf]
  %v21 = vld [vmem:[%s0 + $0x18] sm:$0xf]
  %v22 = vld [vmem:[%s0 + $0x1c] sm:$0xf]
  %v23 = vld [vmem:[%s0 + $0x20] sm:$0xf]
  %v24 = vld [vmem:[%s0 + $0x24] sm:$0xf]
  %v25 = vld [vmem:[%s0 + $0x28] sm:$0xf]
  %v26 = vld [vmem:[%s0 + $0x2c] sm:$0xf]
  %v27 = vld [vmem:[%s0 + $0x30] sm:$0xf]
  %v28 = vld [vmem:[%s0 + $0x34] sm:$0xf]
  %v29 = vld [vmem:[%s0 + $0x38] sm:$0xf]
  %v30 = vld [vmem:[%s0 + $0x3c] sm:$0xf]
  %v31 = vld [vmem:[%s1] sm:$0xf]
  %v32 = vld [vmem:[%s1 + $0x4] sm:$0xf]
  %v33 = vld [vmem:[%s1 + $0x8] sm:$0xf]
  %v34 = vld [vmem:[%s1 + $0xc] sm:$0xf]
  %v35 = vld [vmem:[%s2] sm:$0x1]
  %v37 = vperm.slane %v35, 0
  %v55 = vunpack.c.l.b16 %v15
  %v56 = vunpack.c.l.b16 %v16
  %v57 = vunpack.c.l.b16 %v17
  %v58 = vunpack.c.l.b16 %v18
  %v59 = vunpack.c.l.b16 %v19
  %v60 = vunpack.c.l.b16 %v20
  %v61 = vunpack.c.l.b16 %v21
  %v62 = vunpack.c.l.b16 %v22
  %v63 = vunpack.c.l.b16 %v23
  %v64 = vunpack.c.l.b16 %v24
  %v65 = vunpack.c.l.b16 %v25
  %v66 = vunpack.c.l.b16 %v26
  %v67 = vunpack.c.l.b16 %v27
  %v68 = vunpack.c.l.b16 %v28
  %v69 = vunpack.c.l.b16 %v29
  %v70 = vunpack.c.l.b16 %v30
  %v71 = vpack.c.b16 %v56, %v55
  %v72 = vpack.c.b16 %v58, %v57
  %v73 = vpack.c.b16 %v60, %v59
  %v74 = vpack.c.b16 %v62, %v61
  %v75 = vpack.c.b16 %v64, %v63
  %v76 = vpack.c.b16 %v66, %v65
  %v77 = vpack.c.b16 %v68, %v67
  %v78 = vpack.c.b16 %v70, %v69
  %v83 = vunpack.c.l.b16 %v31
  %v84 = vunpack.c.l.b16 %v32
  %v85 = vunpack.c.l.b16 %v33
  %v86 = vunpack.c.l.b16 %v34
  %v87 = vpack.c.b16 %v84, %v83
  %v88 = vpack.c.b16 %v86, %v85
  %vm91 = vcmask 261120
  %v93 = vsel %vm91, %v71, 0
  %v96 = vsel %vm91, %v72, 0
  %v99 = vsel %vm91, %v73, 0
  %v102 = vsel %vm91, %v74, 0
  %v105 = vsel %vm91, %v75, 0
  %v108 = vsel %vm91, %v76, 0
  %v111 = vsel %vm91, %v77, 0
  %v114 = vsel %vm91, %v78, 0
  %116 = vmatpush.bf16.msra.mxu0 0
  %117 = vmatpush.bf16.msra.mxu0 0
  %118 = vmatpush.bf16.msra.mxu0 0
  %119 = vmatpush.bf16.msra.mxu0 0
  %120 = vmatpush.bf16.msra.mxu0 0
  %121 = vmatpush.bf16.msra.mxu0 0
  %122 = vmatpush.bf16.msra.mxu0 %v88
  %123 = vmatpush.bf16.msra.mxu0 %v87
  %124 = vmatmul.bf16.gmra.mxu0 %v93
  %v125 = vpop.f32.mrf.mxu0
  %v126 = vadd.f32 %v37, %v125
  %v127 = vpop.f32.mrf.mxu0
  %v128 = vadd.f32 %v37, %v127
  %129 = vmatmul.bf16.gmra.mxu0 %v96
  %v130 = vpop.f32.mrf.mxu0
  %v131 = vadd.f32 %v37, %v130
  %v132 = vpop.f32.mrf.mxu0
  %v133 = vadd.f32 %v37, %v132
  %134 = vmatmul.bf16.gmra.mxu0 %v99
  %v135 = vpop.f32.mrf.mxu0
  %v136 = vadd.f32 %v37, %v135
  %v137 = vpop.f32.mrf.mxu0
  %v138 = vadd.f32 %v37, %v137
  %139 = vmatmul.bf16.gmra.mxu0 %v102
  %v140 = vpop.f32.mrf.mxu0
  %v141 = vadd.f32 %v37, %v140
  %v142 = vpop.f32.mrf.mxu0
  %v143 = vadd.f32 %v37, %v142
  %144 = vmatmul.bf16.gmra.mxu0 %v105
  %v145 = vpop.f32.mrf.mxu0
  %v146 = vadd.f32 %v37, %v145
  %v147 = vpop.f32.mrf.mxu0
  %v148 = vadd.f32 %v37, %v147
  %149 = vmatmul.bf16.gmra.mxu0 %v108
  %v150 = vpop.f32.mrf.mxu0
  %v151 = vadd.f32 %v37, %v150
  %v152 = vpop.f32.mrf.mxu0
  %v153 = vadd.f32 %v37, %v152
  %154 = vmatmul.bf16.gmra.mxu0 %v111
  %v155 = vpop.f32.mrf.mxu0
  %v156 = vadd.f32 %v37, %v155
  %v157 = vpop.f32.mrf.mxu0
  %v158 = vadd.f32 %v37, %v157
  %159 = vmatmul.bf16.gmra.mxu0 %v114
  %v160 = vpop.f32.mrf.mxu0
  %v161 = vadd.f32 %v37, %v160
  %v162 = vpop.f32.mrf.mxu0
  %v163 = vadd.f32 %v37, %v162
  %164 = vdwg.mxu0
  %v165 = vpack.c.bf16 %v126, %v126
  %v166 = vpack.c.bf16 %v128, %v128
  %v167 = vpack.c.bf16 %v131, %v131
  %v168 = vpack.c.bf16 %v133, %v133
  %v169 = vpack.c.bf16 %v136, %v136
  %v170 = vpack.c.bf16 %v138, %v138
  %v171 = vpack.c.bf16 %v141, %v141
  %v172 = vpack.c.bf16 %v143, %v143
  %v173 = vpack.c.bf16 %v146, %v146
  %v174 = vpack.c.bf16 %v148, %v148
  %v175 = vpack.c.bf16 %v151, %v151
  %v176 = vpack.c.bf16 %v153, %v153
  %v177 = vpack.c.bf16 %v156, %v156
  %v178 = vpack.c.bf16 %v158, %v158
  %v179 = vpack.c.bf16 %v161, %v161
  %v180 = vpack.c.bf16 %v163, %v163
  %vm181 = vcmask 781312
  %182 = vst.msk [vmem:[%s3] sm:$0xf] %vm181, %v165
  %183 = vst.msk [vmem:[%s3 + $0x4] sm:$0xf] %vm181, %v166
  %184 = vst.msk [vmem:[%s3 + $0x8] sm:$0xf] %vm181, %v167
  %185 = vst.msk [vmem:[%s3 + $0xc] sm:$0xf] %vm181, %v168
  %186 = vst.msk [vmem:[%s3 + $0x10] sm:$0xf] %vm181, %v169
  %187 = vst.msk [vmem:[%s3 + $0x14] sm:$0xf] %vm181, %v170
  %188 = vst.msk [vmem:[%s3 + $0x18] sm:$0xf] %vm181, %v171
  %189 = vst.msk [vmem:[%s3 + $0x1c] sm:$0xf] %vm181, %v172
  %190 = vst.msk [vmem:[%s3 + $0x20] sm:$0xf] %vm181, %v173
  %191 = vst.msk [vmem:[%s3 + $0x24] sm:$0xf] %vm181, %v174
  %192 = vst.msk [vmem:[%s3 + $0x28] sm:$0xf] %vm181, %v175
  %193 = vst.msk [vmem:[%s3 + $0x2c] sm:$0xf] %vm181, %v176
  %194 = vst.msk [vmem:[%s3 + $0x30] sm:$0xf] %vm181, %v177
  %195 = vst.msk [vmem:[%s3 + $0x34] sm:$0xf] %vm181, %v178
  %196 = vst.msk [vmem:[%s3 + $0x38] sm:$0xf] %vm181, %v179
  %197 = vst.msk [vmem:[%s3 + $0x3c] sm:$0xf] %vm181, %v180
  // Predicated region
  $region14: #{tpu_custom_call.1} parent=0 // pred_check
    _
  $region15: #{tpu_custom_call.1} parent=0 // pred_check_branch
    %199 = sbr.rel (0) target = $region17
  $region16: #{tpu_custom_call.1} parent=0 // pred_region
    _
  $region17: #{tpu_custom_call.1} parent=0 // pred_fallthru
    _
  // Predicated region
  $region18: #{tpu_custom_call.1} parent=0 // pred_check
    _
  $region19: #{tpu_custom_call.1} parent=0 // pred_check_branch
    %201 = sbr.rel (0) target = $region21
  $region20: #{tpu_custom_call.1} parent=0 // pred_region
    _
  $region21: #{tpu_custom_call.1} parent=0 // pred_fallthru
    _

</llo_original>
